<compile_context>
chip_gen: v6e
topology: v6e:2x2x1
jax: 0.10.0
libtpu: 0.0.40
codegen_flags: <defaults>
</compile_context>

<pallas_src>
import jax
import jax.numpy as jnp
from jax.experimental import pallas as pl
from jax.experimental.pallas import tpu as pltpu


def noise_kernel(x_ref, noise_ref, scale_ref, o_ref):
    """out = x + noise * scale on one (bpb, C, hw_tile) block.

    x_ref:     (bpb,  C, hwt)   activation dtype
    noise_ref: (nbpb, 1, hwt)   nbpb in {1, bpb}; sublane-broadcast over C
    scale_ref: (1,    C, 1)     parameter dtype (f32); lane-broadcast over HW
    o_ref:     (bpb,  C, hwt)
    """
    o_ref[...] = (x_ref[...] + noise_ref[...] * scale_ref[...]).astype(o_ref.dtype)


def _pick_hw_tile(hw, rows_per_block, itemsize, budget_bytes):
    """Largest lane tile fitting the per-buffer VMEM budget.

    Whole HW if it fits (always layout-legal: block dim == array dim).
    Otherwise a multiple of 128; prefer a divisor of HW (no masked edge
    block), else a non-dividing tile is used with a cdiv grid.
    """
    if rows_per_block * hw * itemsize <= budget_bytes:
        return hw
    max_t = max(128, ((budget_bytes // (rows_per_block * itemsize)) // 128) * 128)
    max_t = min(max_t, (hw // 128) * 128)
    t = max_t
    while t >= 128:
        if hw % t == 0:
            return t
        t -= 128
    return max_t  # non-dividing: edge block masked by the cdiv grid


def noise_layer_forward(x, noise, noise_scale,
                        budget_bytes=4 << 20,
                        vmem_limit_bytes=48 << 20):
    """JAX/Pallas equivalent of NoiseLayer.forward.

    Args:
      x:           (B, C, H, W)
      noise:       (B, 1, H, W) fresh per-call noise (fixed=False path) or
                   (1, 1, H, W) fixed_noise buffer (fixed=True path; broadcast
                   over batch happens via the index_map, never in HBM).
      noise_scale: (1, C, 1, 1) learnable per-channel scale (kept in its own
                   dtype, typically f32).
    Returns:
      (B, C, H, W) = x + noise * noise_scale, in x.dtype.
    """
    B, C, H, W = x.shape
    HW = H * W
    dt = x.dtype
    itemsize = jnp.dtype(dt).itemsize

    noise = noise.astype(dt)  # matches `noise.to(dtype=x.dtype)` in the module
    assert noise.shape[0] in (1, B), "noise batch must be 1 or B"

    # Tiny spatial maps: a standalone pallas_call is pure overhead and forces
    # masked partial stores; let XLA fuse the add instead.
    # TODO(synk): fuse this add into the adjacent conv/elementwise kernel.
    if HW < 128:
        return (x + noise * noise_scale).astype(dt)

    x3 = x.reshape(B, C, HW)
    n3 = noise.reshape(noise.shape[0], 1, HW)
    scale3 = noise_scale.reshape(1, C, 1)          # keep parameter dtype
    noise_is_shared = (noise.shape[0] == 1)

    # Lane tile under the per-buffer budget, then fold as many batches per
    # block as still fit (prefer a divisor of B so the batch grid is exact).
    hw_tile = _pick_hw_tile(HW, C, itemsize, budget_bytes)
    per_batch_bytes = C * hw_tile * itemsize
    bpb = max(1, min(B, budget_bytes // max(per_batch_bytes, 1)))
    while bpb > 1 and B % bpb != 0:
        bpb -= 1

    # v7x megacore: a non-trivial problem should have >= 2 grid steps so both
    # TensorCores get work (no-op for tiny shapes or single-TC v5e/v6e).
    total_bytes = B * C * HW * itemsize
    if pl.cdiv(B, bpb) * pl.cdiv(HW, hw_tile) == 1 and total_bytes > (1 << 20):
        if hw_tile % 256 == 0:
            hw_tile //= 2
        elif bpb > 1:
            bpb = max(1, bpb // 2)

    grid = (pl.cdiv(B, bpb), pl.cdiv(HW, hw_tile))

    if noise_is_shared:
        # fixed=True path: read the (1,1,HW) buffer directly, never expand it.
        noise_spec = pl.BlockSpec((1, 1, hw_tile), lambda i, j: (0, 0, j))
    else:
        noise_spec = pl.BlockSpec((bpb, 1, hw_tile), lambda i, j: (i, 0, j))

    out = pl.pallas_call(
        noise_kernel,
        out_shape=jax.ShapeDtypeStruct((B, C, HW), dt),
        grid=grid,
        in_specs=[
            pl.BlockSpec((bpb, C, hw_tile), lambda i, j: (i, 0, j)),
            noise_spec,
            pl.BlockSpec((1, C, 1), lambda i, j: (0, 0, 0)),
        ],
        out_specs=pl.BlockSpec((bpb, C, hw_tile), lambda i, j: (i, 0, j)),
        compiler_params=pltpu.CompilerParams(
            dimension_semantics=("parallel", "parallel"),
            vmem_limit_bytes=vmem_limit_bytes),
    )(x3, n3, scale3)
    return out.reshape(B, C, H, W)


if __name__ == "__main__":
    B, C, H, W = 2, 4, 16, 16
    key = jax.random.PRNGKey(0)
    kx, kn, ks, kfix = jax.random.split(key, 4)

    x = jax.random.normal(kx, (B, C, H, W), dtype=jnp.float32)

    # Per-call noise (PyTorch: torch.randn([batch, 1, size, size])).
    noise = jax.random.normal(kn, (B, 1, H, W), dtype=jnp.float32)

    # Parameter init exactly as in __init__: noise_scale = zeros(1, dim, 1, 1)
    noise_scale = jnp.zeros((1, C, 1, 1), dtype=jnp.float32)
    # fixed_noise buffer (fixed=True path).
    fixed_noise = jax.random.normal(kfix, (1, 1, H, W), dtype=jnp.float32)

    # --- as-initialized (zero) scale, fixed=False path ---
    out = noise_layer_forward(x, noise, noise_scale)
    jax.block_until_ready(out)
    ref = x + noise * noise_scale
    assert jnp.allclose(out, ref, atol=1e-6), "mismatch with zero scale"

    # --- nonzero (as-if-trained) scale, fixed=False path ---
    noise_scale2 = jax.random.normal(ks, (1, C, 1, 1), dtype=jnp.float32)
    out2 = noise_layer_forward(x, noise, noise_scale2)
    jax.block_until_ready(out2)
    ref2 = x + noise * noise_scale2
    assert jnp.allclose(out2, ref2, atol=1e-5), "mismatch with nonzero scale"

    # --- fixed=True path: (1,1,H,W) noise broadcast over batch via index_map ---
    out3 = noise_layer_forward(x, fixed_noise, noise_scale2)
    jax.block_until_ready(out3)
    ref3 = x + fixed_noise * noise_scale2
    assert jnp.allclose(out3, ref3, atol=1e-5), "mismatch on fixed-noise path"

    print("KERNEL_OK")
</pallas_src>

<mosaic_0001>
module attributes {stable_mosaic.version = 11 : i64} {
  func.func @noise_kernel(%arg0: i32, %arg1: i32, %arg2: memref<2x4x256xf32, #tpu.memory_space<vmem>>, %arg3: memref<2x1x256xf32, #tpu.memory_space<vmem>>, %arg4: memref<1x4x1xf32, #tpu.memory_space<vmem>>, %arg5: memref<2x4x256xf32, #tpu.memory_space<vmem>>) attributes {dimension_semantics = [#tpu.dimension_semantics<parallel>, #tpu.dimension_semantics<parallel>], iteration_bounds = array<i64: 1, 1>, scalar_prefetch = 0 : i64, scratch_operands = 0 : i64, tpu.core_type = #tpu.core_type<tc>, window_params = [{transform_indices = @transform_0, window_bounds = array<i64: 2, 4, 256>}, {transform_indices = @transform_1, window_bounds = array<i64: 2, 1, 256>}, {pipeline_mode = #tpu.pipeline_mode<synchronous>, transform_indices = @transform_2, window_bounds = array<i64: 1, 4, 1>}, {transform_indices = @transform_3, window_bounds = array<i64: 2, 4, 256>}]} {
    %c0 = arith.constant 0 : index
    %c0_0 = arith.constant 0 : index
    %c0_1 = arith.constant 0 : index
    %0 = vector.load %arg2[%c0, %c0_0, %c0_1] : memref<2x4x256xf32, #tpu.memory_space<vmem>>, vector<2x4x256xf32>
    %c0_2 = arith.constant 0 : index
    %c0_3 = arith.constant 0 : index
    %c0_4 = arith.constant 0 : index
    %1 = vector.load %arg3[%c0_2, %c0_3, %c0_4] : memref<2x1x256xf32, #tpu.memory_space<vmem>>, vector<2x1x256xf32>
    %c0_5 = arith.constant 0 : index
    %c0_6 = arith.constant 0 : index
    %c0_7 = arith.constant 0 : index
    %2 = vector.load %arg4[%c0_5, %c0_6, %c0_7] : memref<1x4x1xf32, #tpu.memory_space<vmem>>, vector<1x4x1xf32>
    %3 = vector.broadcast %1 : vector<2x1x256xf32> to vector<2x4x256xf32>
    %4 = vector.broadcast %2 : vector<1x4x1xf32> to vector<2x4x256xf32>
    %5 = arith.mulf %3, %4 : vector<2x4x256xf32>
    %6 = arith.addf %0, %5 : vector<2x4x256xf32>
    %c0_8 = arith.constant 0 : index
    %c0_9 = arith.constant 0 : index
    %c0_10 = arith.constant 0 : index
    %7 = vector.load %arg5[%c0_8, %c0_9, %c0_10] : memref<2x4x256xf32, #tpu.memory_space<vmem>>, vector<2x4x256xf32>
    tpu.vector_store %arg5[%c0_8, %c0_9, %c0_10], %6 {strides = array<i32>} : memref<2x4x256xf32, #tpu.memory_space<vmem>>, vector<2x4x256xf32>,
    return
  }
  func.func @transform_0(%arg0: i32, %arg1: i32) -> (i32, i32, i32) {
    %c0_i32 = arith.constant 0 : i32
    %c0_i32_0 = arith.constant 0 : i32
    return %arg0, %c0_i32, %arg1 : i32, i32, i32
  }
  func.func @transform_1(%arg0: i32, %arg1: i32) -> (i32, i32, i32) {
    %c0_i32 = arith.constant 0 : i32
    %c0_i32_0 = arith.constant 0 : i32
    return %arg0, %c0_i32, %arg1 : i32, i32, i32
  }
  func.func @transform_2(%arg0: i32, %arg1: i32) -> (i32, i32, i32) {
    %c0_i32 = arith.constant 0 : i32
    %c0_i32_0 = arith.constant 0 : i32
    %c0_i32_1 = arith.constant 0 : i32
    %c0_i32_2 = arith.constant 0 : i32
    return %c0_i32, %c0_i32_0, %c0_i32_1 : i32, i32, i32
  }
  func.func @transform_3(%arg0: i32, %arg1: i32) -> (i32, i32, i32) {
    %c0_i32 = arith.constant 0 : i32
    %c0_i32_0 = arith.constant 0 : i32
    return %arg0, %c0_i32, %arg1 : i32, i32, i32
  }
}

</mosaic_0001>

<llo_original>
// kernel: tpu_custom_call.1
$region0: #{tpu_custom_call.1}
  #allocation0 [shape = 'u32[]', space=smem, size = 0x4, offset = 0x4, fixed_abs, tag = 'smem constant byte address 0x4 - core index']
  #allocation1 [shape = 'u32[144,128]{1,0:T(1,128)}', space=vmem, size = 0x12000, scoped, tag = 'internal scratch']
  %s0 = inlined_call_operand.hbm [shape: f32[2,4,256], index: 0, kind: input, shape index: {}]
  %s1 = inlined_call_operand.vmem [shape: f32[2,1,256], index: 1, kind: input, shape index: {}]
  %s2 = inlined_call_operand.vmem [shape: f32[1,4,1], index: 2, kind: input, shape index: {}]
  %s3 = inlined_call_operand.hbm [shape: f32[2,4,256], index: 3, kind: output, shape index: {}]
  %s4 = sld [smem:[#allocation0]]
  $region26: #{tpu_custom_call.1} parent=0
    _
  %s6 = ssub.s32 1, %s4
  %s7 = scalar_select 0, %s6, %s4
  $region1: #{tpu_custom_call.1} parent=0
    #allocation2 [shape = 'u8[8192]{0}', space=vmem, size = 0x2000, scoped, tag = 'input window, operand 0, single buffered']
    #allocation3 [shape = 's32[1]{0}', space=sflag, size = 0x4, scoped, tag = 'scoped memory for tpu_custom_call.1']
    #allocation4 [shape = 's32[1]{0}', space=sflag, size = 0x4, scoped, tag = 'scoped memory for tpu_custom_call.1']
    #allocation5 [shape = 'u8[8192]{0}', space=vmem, size = 0x2000, scoped, tag = 'output window, operand 0, single buffered']
    %8 = vsyncpa [#allocation3], 0
    %9 = vsyncpa [#allocation4], 0
    // Predicated region
    $region2: #{tpu_custom_call.1} parent=1 // pred_check
      _
    $region3: #{tpu_custom_call.1} parent=1 // pred_check_branch
      %11 = sbr.rel (0) target = $region5
    $region4: #{tpu_custom_call.1} parent=1 // pred_region
      %s13 = ssub.s32 256, 256
      %14 = vsyncadd [#allocation3], %s13
      %s15 = sshll.u32 [#allocation2], 4
      %s16 = int_to_ptr.vmem [resolvable:$true] %s15
      %21 = dma.hbm_to_vmem [thread:$0]  %s0, 256, %s16, [#allocation3], 128, 128, 8
    $region5: #{tpu_custom_call.1} parent=1 // pred_fallthru
      _
    // Predicated region
    $region6: #{tpu_custom_call.1} parent=1 // pred_check
      _
    $region7: #{tpu_custom_call.1} parent=1 // pred_check_branch
      %23 = sbr.rel (0) target = $region9
    $region8: #{tpu_custom_call.1} parent=1 // pred_region
      _
    $region9: #{tpu_custom_call.1} parent=1 // pred_fallthru
      _
    // Predicated region
    $region10: #{tpu_custom_call.1} parent=1 // pred_check
      _
    $region11: #{tpu_custom_call.1} parent=1 // pred_check_branch
      %25 = sbr.rel (0) target = $region13
    $region12: #{tpu_custom_call.1} parent=1 // pred_region
      _
    $region13: #{tpu_custom_call.1} parent=1 // pred_fallthru
      _
    // Predicated region
    $region14: #{tpu_custom_call.1} parent=1 // pred_check
      _
    $region15: #{tpu_custom_call.1} parent=1 // pred_check_branch
      %27 = sbr.rel (0) target = $region17
    $region16: #{tpu_custom_call.1} parent=1 // pred_region
      %28 = dma.done [#allocation3], 256
    $region17: #{tpu_custom_call.1} parent=1 // pred_fallthru
      _
    %v29 = vld [vmem:[#allocation2] sm:$0xff]
    %v30 = vld [vmem:[#allocation2 + $0x8] sm:$0xff]
    %v31 = vld [vmem:[%s1] sm:$0x3]
    %v32 = vld [vmem:[%s1 + $0x2] sm:$0x3]
    %v33 = vld [vmem:[%s2] sm:$0xf]
    %v36 = vlaneseq
    %v37 = vshrl.u32 %v36, 7
    %v38 = vsub.s32 0, %v37
    %v39 = vrot.slane %v31, %v38
    %v40 = vlaneseq
    %v41 = vshrl.u32 %v40, 7
    %v42 = vsub.s32 1, %v41
    %v43 = vrot.slane %v31, %v42
    %v44 = vlaneseq
    %v45 = vshrl.u32 %v44, 7
    %v46 = vsub.s32 0, %v45
    %v47 = vrot.slane %v32, %v46
    %v48 = vlaneseq
    %v49 = vshrl.u32 %v48, 7
    %v50 = vsub.s32 1, %v49
    %v51 = vrot.slane %v32, %v50
    %57 = vset.pattern.permute.xlu0 0
    %58 = vperm.xlu0 %57, %v33
    %v59 = vpop.permute.xlu0 %58
    %v61 = vmul.f32 %v39, %v59
    %v62 = vmul.f32 %v43, %v59
    %v63 = vmul.f32 %v47, %v59
    %v64 = vmul.f32 %v51, %v59
    %v69 = vcombine.low %v61, %v62
    %v70 = vcombine.low %v63, %v64
    %v73 = vadd.f32 %v29, %v69
    %v74 = vadd.f32 %v30, %v70
    %75 = vst [vmem:[#allocation5] sm:$0xff] %v73
    %76 = vst [vmem:[#allocation5 + $0x8] sm:$0xff] %v74
    // Predicated region
    $region18: #{tpu_custom_call.1} parent=1 // pred_check
      _
    $region19: #{tpu_custom_call.1} parent=1 // pred_check_branch
      %78 = sbr.rel (0) target = $region21
    $region20: #{tpu_custom_call.1} parent=1 // pred_region
      %s80 = ssub.s32 256, 256
      %81 = vsyncadd [#allocation4], %s80
      %s82 = sshll.u32 [#allocation5], 4
      %s83 = int_to_ptr.vmem [resolvable:$true] %s82
      %88 = dma.vmem_to_hbm [thread:$0]  %s83, 256, %s3, [#allocation4], 128, 128, 8
    $region21: #{tpu_custom_call.1} parent=1 // pred_fallthru
      _
    // Predicated region
    $region22: #{tpu_custom_call.1} parent=1 // pred_check
      _
    $region23: #{tpu_custom_call.1} parent=1 // pred_check_branch
      %90 = sbr.rel (0) target = $region25
    $region24: #{tpu_custom_call.1} parent=1 // pred_region
      %91 = dma.done [#allocation4], 256
    $region25: #{tpu_custom_call.1} parent=1 // pred_fallthru
      _
    %92 = vsyncpa [#allocation3], 1
    %93 = vsyncpa [#allocation4], 1

</llo_original>
